<compile_context>
chip_gen: v5e
topology: v5e:2x2
jax: 0.10.0
libtpu: 0.0.40
codegen_flags: <defaults>
</compile_context>

<pallas_src>
import functools

import jax
import jax.numpy as jnp
from jax.experimental import pallas as pl
from jax.experimental.pallas import tpu as pltpu


LANES = 128
SUBLANES = 8
# Scoped VMEM budget: below v7x's 64 MiB physical ceiling, far below
# v5e/v6e's 128 MiB physical; comfortably covers the largest block choice.
VMEM_LIMIT_BYTES = 40 << 20


def _round_up(x: int, m: int) -> int:
    return ((x + m - 1) // m) * m


def _round_down(x: int, m: int) -> int:
    return (x // m) * m


@functools.lru_cache(maxsize=1)
def _pick_block_bytes() -> int:
    """Per-generation block size: bigger on v7x (faster HBM, smaller VMEM)."""
    try:
        info = pltpu.get_tpu_info()
        vmem = getattr(info, "vmem_capacity_bytes", None)
        if vmem is not None and vmem <= 80 * 1024 * 1024:
            # v7x: 64 MiB VMEM/TC but ~3.2 TB/s HBM -> amortize per-step cost.
            return 6 * 1024 * 1024
    except Exception:
        pass
    # v5e / v6e (or unknown): 4 MiB blocks, ~86% of HBM roofline measured.
    return 4 * 1024 * 1024


def _h_sigmoid_math(x: jax.Array) -> jax.Array:
    # relu6(x + 3) / 6, computed in f32 to match PyTorch's math for
    # low-precision inputs (free: the op is HBM-bound).
    xf = x.astype(jnp.float32)
    return (jnp.clip(xf + 3.0, 0.0, 6.0) / 6.0).astype(x.dtype)


def _h_sigmoid_kernel(x_ref, o_ref):
    o_ref[...] = _h_sigmoid_math(x_ref[...])


@jax.jit
def h_sigmoid(x: jax.Array) -> jax.Array:
    """Applies relu6(x + 3) / 6 elementwise. Accepts any shape (e.g. NCHW)."""
    orig_shape = x.shape
    dtype = x.dtype
    itemsize = jnp.dtype(dtype).itemsize

    flat = x.reshape(-1)
    n = flat.shape[0]
    n_bulk = _round_down(n, LANES)

    if n_bulk == 0:
        # Entire array is smaller than one 128-lane row: pure jnp path.
        return _h_sigmoid_math(flat).reshape(orig_shape)

    rows = n_bulk // LANES
    bulk2d = flat[:n_bulk].reshape(rows, LANES)

    # Sublane packing granularity: 8 rows (32-bit), 16 (16-bit), 32 (8-bit).
    sub_mult = SUBLANES * max(1, 4 // itemsize)

    if rows <= sub_mult:
        # Single block equal to the full array (always a legal block shape).
        block_rows = rows
        steps = 1
    else:
        block_bytes = _pick_block_bytes()
        max_block_rows = max(
            sub_mult, _round_down(block_bytes // (LANES * itemsize), sub_mult)
        )
        block_rows = min(max_block_rows, _round_up(rows, sub_mult))
        steps = pl.cdiv(rows, block_rows)
        if steps < 8 and steps % 2 == 1:
            # Even step count so v7x's two TensorCores each take ~half the
            # grid (3-step grids leave one core idle for a third of the time).
            block_rows = _round_up(pl.cdiv(rows, steps + 1), sub_mult)
            steps = pl.cdiv(rows, block_rows)

    out2d = pl.pallas_call(
        _h_sigmoid_kernel,
        out_shape=jax.ShapeDtypeStruct((rows, LANES), dtype),
        grid_spec=pltpu.PrefetchScalarGridSpec(
            num_scalar_prefetch=0,
            grid=(steps,),
            in_specs=[pl.BlockSpec((block_rows, LANES), lambda i: (i, 0))],
            out_specs=pl.BlockSpec((block_rows, LANES), lambda i: (i, 0)),
        ),
        compiler_params=pltpu.CompilerParams(
            dimension_semantics=("parallel",),
            vmem_limit_bytes=VMEM_LIMIT_BYTES,
        ),
        cost_estimate=pl.CostEstimate(
            flops=4 * n_bulk,
            transcendentals=0,
            bytes_accessed=2 * n_bulk * itemsize,
        ),
    )(bulk2d)

    out_bulk = out2d.reshape(-1)
    if n_bulk == n:
        return out_bulk.reshape(orig_shape)

    # Ragged tail (< 128 elements): plain jnp under the same jit — no extra
    # full-array HBM passes, just a tiny tail compute + final assembly.
    tail = _h_sigmoid_math(flat[n_bulk:])
    return jnp.concatenate([out_bulk, tail]).reshape(orig_shape)


if __name__ == "__main__":
    key = jax.random.PRNGKey(0)

    # NCHW input, as the module would receive inside MobileNetV3.
    x = jax.random.normal(key, (2, 4, 16, 16), dtype=jnp.float32) * 4.0
    y = jax.block_until_ready(h_sigmoid(x))
    y_ref = jnp.clip(x + 3.0, 0.0, 6.0) / 6.0
    assert y.shape == x.shape and y.dtype == x.dtype
    assert jnp.allclose(y, y_ref, atol=1e-6), "mismatch vs reference (aligned)"

    # Ragged total size (not a multiple of 128): bulk kernel + jnp tail path.
    x2 = jax.random.normal(jax.random.PRNGKey(1), (3, 5, 7, 11), dtype=jnp.float32) * 4.0
    y2 = jax.block_until_ready(h_sigmoid(x2))
    y2_ref = jnp.clip(x2 + 3.0, 0.0, 6.0) / 6.0
    assert y2.shape == x2.shape and y2.dtype == x2.dtype
    assert jnp.allclose(y2, y2_ref, atol=1e-6), "mismatch vs reference (ragged)"

    # bf16 input: kernel upcasts to f32 internally, stores back as bf16.
    x3 = jax.random.normal(jax.random.PRNGKey(2), (2, 8, 8, 8), dtype=jnp.bfloat16) * 4.0
    y3 = jax.block_until_ready(h_sigmoid(x3))
    y3_ref = (jnp.clip(x3.astype(jnp.float32) + 3.0, 0.0, 6.0) / 6.0).astype(jnp.bfloat16)
    assert y3.shape == x3.shape and y3.dtype == x3.dtype
    assert jnp.allclose(
        y3.astype(jnp.float32), y3_ref.astype(jnp.float32), atol=1e-2
    ), "mismatch vs reference (bf16)"

    print("KERNEL_OK")
</pallas_src>

<mosaic_0001>
module attributes {stable_mosaic.version = 11 : i64} {
  func.func @_h_sigmoid_kernel(%arg0: i32, %arg1: memref<8x128xf32, #tpu.memory_space<vmem>>, %arg2: memref<8x128xf32, #tpu.memory_space<vmem>>) attributes {dimension_semantics = [#tpu.dimension_semantics<parallel>], iteration_bounds = array<i64: 2>, scalar_prefetch = 0 : i64, scratch_operands = 0 : i64, tpu.core_type = #tpu.core_type<tc>, window_params = [{transform_indices = @transform_0, window_bounds = array<i64: 8, 128>}, {transform_indices = @transform_1, window_bounds = array<i64: 8, 128>}]} {
    %c0 = arith.constant 0 : index
    %c0_0 = arith.constant 0 : index
    %0 = vector.load %arg1[%c0, %c0_0] : memref<8x128xf32, #tpu.memory_space<vmem>>, vector<8x128xf32>
    %cst = arith.constant 3.000000e+00 : f32
    %1 = vector.broadcast %cst : f32 to vector<8x128xf32>
    %2 = arith.addf %0, %1 : vector<8x128xf32>
    %cst_1 = arith.constant 0.000000e+00 : f32
    %cst_2 = arith.constant 6.000000e+00 : f32
    %3 = vector.broadcast %cst_1 : f32 to vector<8x128xf32>
    %4 = arith.maximumf %3, %2 : vector<8x128xf32>
    %5 = vector.broadcast %cst_2 : f32 to vector<8x128xf32>
    %6 = arith.minimumf %5, %4 : vector<8x128xf32>
    %cst_3 = arith.constant 6.000000e+00 : f32
    %7 = vector.broadcast %cst_3 : f32 to vector<8x128xf32>
    %8 = arith.divf %6, %7 : vector<8x128xf32>
    %c0_4 = arith.constant 0 : index
    %c0_5 = arith.constant 0 : index
    %9 = vector.load %arg2[%c0_4, %c0_5] : memref<8x128xf32, #tpu.memory_space<vmem>>, vector<8x128xf32>
    tpu.vector_store %arg2[%c0_4, %c0_5], %8 {strides = array<i32>} : memref<8x128xf32, #tpu.memory_space<vmem>>, vector<8x128xf32>,
    return
  }
  func.func @transform_0(%arg0: i32) -> (i32, i32) {
    %c0_i32 = arith.constant 0 : i32
    %c0_i32_0 = arith.constant 0 : i32
    return %arg0, %c0_i32 : i32, i32
  }
  func.func @transform_1(%arg0: i32) -> (i32, i32) {
    %c0_i32 = arith.constant 0 : i32
    %c0_i32_0 = arith.constant 0 : i32
    return %arg0, %c0_i32 : i32, i32
  }
}

</mosaic_0001>

<llo_original>
// kernel: h_sigmoid.1
$region0: #{h_sigmoid.1}
  #allocation0 [shape = 'u32[]', space=smem, size = 0x4, offset = 0x4, fixed_abs, tag = 'smem constant byte address 0x4 - core index']
  #allocation1 [shape = 'u32[72,128]{1,0:T(1,128)}', space=vmem, size = 0x9000, scoped, tag = 'internal scratch']
  %s0 = inlined_call_operand.vmem [shape: f32[16,128], index: 0, kind: input, shape index: {}]
  %s1 = inlined_call_operand.vmem [shape: f32[16,128], index: 1, kind: output, shape index: {}]
  %s2 = sld [smem:[#allocation0]]
  $region37: #{h_sigmoid.1} parent=0
    _
  %s4 = ssub.s32 1, %s2
  %s5 = scalar_select 0, %s4, %s2
  loop: start=0, step=1, limit=4
  $region2: #{h_sigmoid.1} parent=0 // loop_pre_header
    _
  $region3: #{h_sigmoid.1} parent=0 // loop_header
    %s7 = sphi 0, %s11
    %p8 = scmp.ge.s32.totalorder %s7, 4
    %s17 = sphi 0, %s19
    %s20 = sphi 0, %s17
    %s21 = sphi 0, %s20
    %s37 = sphi 0, %s21
    %s43 = sphi 0, %s45
    %s46 = sphi 0, %s43
    %s47 = sphi 0, %s46
    %s63 = sphi 0, %s47
  $region4: #{h_sigmoid.1} parent=0 // loop_header_branch
    %10 = sbr.rel (%p8) target = $region8
  $region5: #{h_sigmoid.1} parent=0 // loop_body
    %s12 = ssub.s32 %s7, 1
    %s13 = ssub.s32 %s7, 2
    %s14 = sadd.s32 %s7, 1
    %s15 = ssub.s32 %s7, %s14
    %p16 = scmp.eq.s32.totalorder %s15, 0
    %s18 = sadd.s32 %s17, 1
    %s19 = scalar_select %p16, %s17, %s18
    %p22 = pneg %p16
    %p23 = scmp.eq.s32.totalorder %s7, 1
    %p24 = por %p22, %p23
    %p25 = scmp.ne.s32.totalorder %s17, %s20
    %p26 = scmp.eq.s32.totalorder %s7, 0
    %p27 = por %p25, %p26
    %p28 = scmp.ne.s32.totalorder %s17, %s20
    %p29 = scmp.eq.s32.totalorder %s12, 1
    %p30 = por %p28, %p29
    %p31 = scmp.ne.s32.totalorder %s20, %s21
    %p32 = scmp.eq.s32.totalorder %s12, 0
    %p33 = por %p31, %p32
    %p34 = scmp.ne.s32.totalorder %s20, %s21
    %p35 = scmp.eq.s32.totalorder %s13, 1
    %p36 = por %p34, %p35
    %p38 = scmp.ne.s32.totalorder %s21, %s37
    %p39 = scmp.eq.s32.totalorder %s13, 0
    %p40 = por %p38, %p39
    %s41 = ssub.s32 %s7, %s14
    %p42 = scmp.eq.s32.totalorder %s41, 0
    %s44 = sadd.s32 %s43, 1
    %s45 = scalar_select %p42, %s43, %s44
    %p48 = pneg %p42
    %p49 = scmp.eq.s32.totalorder %s7, 1
    %p50 = por %p48, %p49
    %p51 = scmp.ne.s32.totalorder %s43, %s46
    %p52 = scmp.eq.s32.totalorder %s7, 0
    %p53 = por %p51, %p52
    %p54 = scmp.ne.s32.totalorder %s43, %s46
    %p55 = scmp.eq.s32.totalorder %s12, 1
    %p56 = por %p54, %p55
    %p57 = scmp.ne.s32.totalorder %s46, %s47
    %p58 = scmp.eq.s32.totalorder %s12, 0
    %p59 = por %p57, %p58
    %p60 = scmp.ne.s32.totalorder %s46, %s47
    %p61 = scmp.eq.s32.totalorder %s13, 1
    %p62 = por %p60, %p61
    %p64 = scmp.ne.s32.totalorder %s47, %s63
    %p65 = scmp.eq.s32.totalorder %s13, 0
    %p66 = por %p64, %p65
    %p67 = scmp.le.s32.totalorder 1, %s7
    %p68 = scmp.lt.s32.totalorder %s7, 3
    %p69 = pnand %p67, %p68
    %p70 = pneg %p69
    // Predicated region
    $region9: #{h_sigmoid.1} parent=5 // pred_check
      _
    $region10: #{h_sigmoid.1} parent=5 // pred_check_branch
      %72 = sbr.rel (%p69) target = $region12
    $region11: #{h_sigmoid.1} parent=5 // pred_region
      %s73 = ssub.s32 %s7, 1
    $region12: #{h_sigmoid.1} parent=5 // pred_fallthru
      _
    %p74 = scmp.lt.s32.totalorder %s7, 2
    // Predicated region
    $region13: #{h_sigmoid.1} parent=5 // pred_check
      %p75 = pneg %p74
    $region14: #{h_sigmoid.1} parent=5 // pred_check_branch
      %77 = sbr.rel (%p75) target = $region16
    $region15: #{h_sigmoid.1} parent=5 // pred_region
      // Predicated region
      $region17: #{h_sigmoid.1} parent=15 // pred_check
        %p78 = pneg %p27
      $region18: #{h_sigmoid.1} parent=15 // pred_check_branch
        %80 = sbr.rel (%p78) target = $region20
      $region19: #{h_sigmoid.1} parent=15 // pred_region
        %p81 = scmp.lt.s32.totalorder %s7, 1
        %s82 = scalar_select %p81, %s7, 1
        %s83 = smul.addr %s82, 8
        %s84 = scalar_lea.vmem %s0, %s83
      $region20: #{h_sigmoid.1} parent=15 // pred_fallthru
        _
    $region16: #{h_sigmoid.1} parent=5 // pred_fallthru
      _
    %p85 = scmp.le.s32.totalorder 1, %s7
    %p86 = scmp.lt.s32.totalorder %s7, 3
    %p87 = pnand %p85, %p86
    %p88 = pneg %p87
    // Predicated region
    $region21: #{h_sigmoid.1} parent=5 // pred_check
      _
    $region22: #{h_sigmoid.1} parent=5 // pred_check_branch
      %90 = sbr.rel (%p87) target = $region24
    $region23: #{h_sigmoid.1} parent=5 // pred_region
      %s91 = ssub.s32 %s7, 1
      %p92 = scmp.lt.s32.totalorder %s12, 1
      %s93 = scalar_select %p92, %s12, 1
      %s94 = smul.addr %s93, 8
      %s95 = scalar_lea.vmem %s0, %s94
      %p96 = pneg %p33
      %p97 = pneg %p30
      %p98 = pneg %p59
      %p99 = pneg %p56
      %p100 = scmp.lt.s32.totalorder %s12, 1
      %s101 = scalar_select %p100, %s12, 1
      %s102 = smul.addr %s101, 8
      %s103 = scalar_lea.vmem %s1, %s102
      %p104 = scmp.lt.s32.totalorder %s12, 1
      %s105 = scalar_select %p104, %s12, 1
      %s106 = smul.addr %s105, 8
      %s107 = scalar_lea.vmem %s0, %s106
      %p108 = scmp.lt.s32.totalorder %s12, 1
      %s109 = scalar_select %p108, %s12, 1
      %s110 = smul.addr %s109, 8
      %s111 = scalar_lea.vmem %s1, %s110
      %v112 = vld [vmem:[%s107] sm:$0xff]
      %v113 = vadd.f32 %v112, 3.0
      %v114 = vmax.f32 %v113, 0.0
      %v115 = vmin.f32 %v114, 6.0
      %v116 = vrcp.pop 6.0
      %v117 = vmul.f32 6.0, %v116
      %v118 = vsub.f32 1.0, %v117
      %v119 = vmul.f32 %v116, %v118
      %v120 = vadd.f32 %v116, %v119
      %vm121 = vweird.f32 %v116
      %v122 = vsel %vm121, %v116, %v120
      %v123 = vmul.f32 %v115, %v122
      %124 = vst [vmem:[%s111] sm:$0xff] %v123
      %p125 = scmp.lt.s32.totalorder %s12, 1
      %s126 = scalar_select %p125, %s12, 1
      %s127 = smul.addr %s126, 8
      %s128 = scalar_lea.vmem %s1, %s127
      // Predicated region
      $region25: #{h_sigmoid.1} parent=23 // pred_check
        %p129 = pneg %p56
      $region26: #{h_sigmoid.1} parent=23 // pred_check_branch
        %131 = sbr.rel (%p129) target = $region28
      $region27: #{h_sigmoid.1} parent=23 // pred_region
        _
      $region28: #{h_sigmoid.1} parent=23 // pred_fallthru
        _
    $region24: #{h_sigmoid.1} parent=5 // pred_fallthru
      _
    %p132 = scmp.le.s32.totalorder 2, %s7
    // Predicated region
    $region29: #{h_sigmoid.1} parent=5 // pred_check
      %p133 = pneg %p132
    $region30: #{h_sigmoid.1} parent=5 // pred_check_branch
      %135 = sbr.rel (%p133) target = $region32
    $region31: #{h_sigmoid.1} parent=5 // pred_region
      %s136 = ssub.s32 %s7, 2
      // Predicated region
      $region33: #{h_sigmoid.1} parent=31 // pred_check
        %p137 = pneg %p62
      $region34: #{h_sigmoid.1} parent=31 // pred_check_branch
        %139 = sbr.rel (%p137) target = $region36
      $region35: #{h_sigmoid.1} parent=31 // pred_region
        %p140 = scmp.lt.s32.totalorder %s13, 1
        %s141 = scalar_select %p140, %s13, 1
        %s142 = smul.addr %s141, 8
        %s143 = scalar_lea.vmem %s1, %s142
      $region36: #{h_sigmoid.1} parent=31 // pred_fallthru
        _
    $region32: #{h_sigmoid.1} parent=5 // pred_fallthru
      _
  $region6: #{h_sigmoid.1} parent=0 // loop_footer
    %s11 = sadd.s32 1, %s7
  $region7: #{h_sigmoid.1} parent=0 // loop_footer_branch
    %6 = sbr.rel target = $region3
  $region8: #{h_sigmoid.1} parent=0 // loop_exit
    _

</llo_original>
